<compile_context>
chip_gen: v6e
topology: v6e:2x2x1
jax: 0.10.0
libtpu: 0.0.40
codegen_flags: <defaults>
</compile_context>

<pallas_src>
import functools

import jax
import jax.numpy as jnp
from jax.experimental import pallas as pl
from jax.experimental.pallas import tpu as pltpu

HIDDEN = 64


def _cdiv(a, b):
    return (a + b - 1) // b


def _round_up(a, b):
    return _cdiv(a, b) * b


def _mlp_kernel(x_ref, w1_ref, b1_ref, w2_ref, b2_ref, w3_ref, b3_ref, o_ref,
                *, pack):
    """One packed row-tile: relu(relu(x@W1+b1)@W2+b2) . w3 + b3 (lane-packed)."""
    # bf16 MXU operands, f32 accumulation.
    xb = x_ref[...].astype(jnp.bfloat16)
    h1 = jnp.dot(xb, w1_ref[...], preferred_element_type=jnp.float32) + b1_ref[...]
    h1 = jnp.maximum(h1, 0.0)

    h2 = jnp.dot(h1.astype(jnp.bfloat16), w2_ref[...],
                 preferred_element_type=jnp.float32) + b2_ref[...]
    h2 = jnp.maximum(h2, 0.0)

    # Final Linear(64 -> 1): broadcast multiply (VPU) + per-64-lane segmented
    # sum (XLU).  Output stays `pack` lanes wide (4 B per original row).
    prod = h2 * w3_ref[...]
    parts = [
        jnp.sum(prod[:, p * HIDDEN:(p + 1) * HIDDEN], axis=-1, keepdims=True)
        for p in range(pack)
    ]
    out = parts[0] if pack == 1 else jnp.concatenate(parts, axis=-1)
    o_ref[...] = (out + b3_ref[...]).astype(o_ref.dtype)


@functools.partial(jax.jit, static_argnames=("row_tile", "pack"))
def dnsmos_head_forward(embeddings, params, *, row_tile=4096, pack=2):
    """Apply the DnsmosHead MLP to the last dim of `embeddings`.

    embeddings: array of shape (..., 64), f32 or bf16
    params: dict with w1(64,64) b1(64,) w2(64,64) b2(64,) w3(64,1) b3(1,)
    returns: f32 array of shape (..., 1)
    """
    lead_shape = embeddings.shape[:-1]
    rows = 1
    for d in lead_shape:
        rows *= d
    if rows == 0:
        return jnp.zeros((*lead_shape, 1), jnp.float32)

    # Effective lane packing (static): 2-way (128 lanes) by default; drop to 1
    # when the row count is not divisible -- no jnp.pad copy is ever needed.
    eff_pack = max(1, pack)
    while eff_pack > 1 and rows % eff_pack != 0:
        eff_pack //= 2

    width = HIDDEN * eff_pack
    prows = rows // eff_pack
    x = embeddings.reshape(prows, width)          # free: contiguous reshape

    # Row tile (in packed rows): big enough to amortize per-step pipeline
    # overhead, capped so the grid has >=2 steps where possible (v7x megacore),
    # 8-sublane aligned.
    tile = min(max(row_tile // eff_pack, 8), _round_up(_cdiv(prows, 2), 8))
    tile = max(8, _round_up(tile, 8))
    grid = (_cdiv(prows, tile),)

    # Weight prep (tiny, one-time under jit): block-diagonal bf16 W1/W2,
    # lane-tiled f32 biases and final weight row.
    w1 = params["w1"].astype(jnp.float32)
    w2 = params["w2"].astype(jnp.float32)
    if eff_pack > 1:
        eye = jnp.eye(eff_pack, dtype=jnp.float32)
        w1 = jnp.kron(eye, w1)
        w2 = jnp.kron(eye, w2)
    w1 = w1.astype(jnp.bfloat16)
    w2 = w2.astype(jnp.bfloat16)
    b1 = jnp.tile(params["b1"].reshape(1, HIDDEN), (1, eff_pack)).astype(jnp.float32)
    b2 = jnp.tile(params["b2"].reshape(1, HIDDEN), (1, eff_pack)).astype(jnp.float32)
    w3 = jnp.tile(params["w3"].reshape(1, HIDDEN), (1, eff_pack)).astype(jnp.float32)
    b3 = params["b3"].reshape(1, 1).astype(jnp.float32)

    kernel = functools.partial(_mlp_kernel, pack=eff_pack)

    out = pl.pallas_call(
        kernel,
        out_shape=jax.ShapeDtypeStruct((prows, eff_pack), jnp.float32),
        grid_spec=pltpu.PrefetchScalarGridSpec(
            num_scalar_prefetch=0,
            grid=grid,
            in_specs=[
                pl.BlockSpec((tile, width), lambda i: (i, 0)),    # x tile
                pl.BlockSpec((width, width), lambda i: (0, 0)),   # W1 (block-diag, bf16)
                pl.BlockSpec((1, width), lambda i: (0, 0)),       # b1 (lane-tiled)
                pl.BlockSpec((width, width), lambda i: (0, 0)),   # W2 (block-diag, bf16)
                pl.BlockSpec((1, width), lambda i: (0, 0)),       # b2 (lane-tiled)
                pl.BlockSpec((1, width), lambda i: (0, 0)),       # w3 row (lane-tiled)
                pl.BlockSpec((1, 1), lambda i: (0, 0)),           # b3
            ],
            out_specs=pl.BlockSpec((tile, eff_pack), lambda i: (i, 0)),
        ),
        compiler_params=pltpu.CompilerParams(
            dimension_semantics=("parallel",),
            vmem_limit_bytes=32 * 1024 * 1024,
        ),
    )(x, w1, b1, w2, b2, w3, b3)

    # (prows, pack) row-major == (rows, 1): packed row i, lane-segment p holds
    # original row i*pack + p.
    return out.reshape(*lead_shape, 1)


def init_params(key):
    """Deterministic init mimicking torch.nn.Linear default (U[-1/sqrt(in), 1/sqrt(in)])."""
    ks = jax.random.split(key, 6)
    bound = 1.0 / jnp.sqrt(jnp.float32(HIDDEN))

    def u(k, shape):
        return jax.random.uniform(k, shape, jnp.float32, -bound, bound)

    return {
        "w1": u(ks[0], (HIDDEN, HIDDEN)),
        "b1": u(ks[1], (HIDDEN,)),
        "w2": u(ks[2], (HIDDEN, HIDDEN)),
        "b2": u(ks[3], (HIDDEN,)),
        "w3": u(ks[4], (HIDDEN, 1)),
        "b3": u(ks[5], (1,)),
    }


def reference_forward(embeddings, params):
    """Pure-JAX f32 reference identical to the PyTorch forward."""
    h = jnp.maximum(embeddings @ params["w1"] + params["b1"], 0.0)
    h = jnp.maximum(h @ params["w2"] + params["b2"], 0.0)
    return h @ params["w3"] + params["b3"]


if __name__ == "__main__":
    key = jax.random.PRNGKey(0)
    k_param, k_x1, k_x2, k_x3 = jax.random.split(key, 4)

    params = init_params(k_param)

    # Small: (batch=2, seq=8, 64) -> 16 rows, 2-way lane-packed, single grid step.
    x1 = jax.random.normal(k_x1, (2, 8, HIDDEN), jnp.float32)
    out1 = jax.block_until_ready(dnsmos_head_forward(x1, params))
    ref1 = reference_forward(x1, params)
    assert out1.shape == (2, 8, 1), out1.shape
    assert jnp.allclose(out1, ref1, atol=5e-2, rtol=5e-2), "mismatch vs reference (test 1)"

    # Ragged multi-step grid (no jnp.pad in the wrapper): 300 rows, tile=128.
    x2 = jax.random.normal(k_x2, (300, HIDDEN), jnp.float32)
    out2 = jax.block_until_ready(dnsmos_head_forward(x2, params, row_tile=128))
    ref2 = reference_forward(x2, params)
    assert out2.shape == (300, 1), out2.shape
    assert jnp.allclose(out2, ref2, atol=5e-2, rtol=5e-2), "mismatch vs reference (test 2)"

    # Odd row count -> pack falls back to 1 (unpacked 64-lane path), ragged grid.
    x3 = jax.random.normal(k_x3, (45, HIDDEN), jnp.float32)
    out3 = jax.block_until_ready(dnsmos_head_forward(x3, params))
    ref3 = reference_forward(x3, params)
    assert out3.shape == (45, 1), out3.shape
    assert jnp.allclose(out3, ref3, atol=5e-2, rtol=5e-2), "mismatch vs reference (test 3)"

    print("KERNEL_OK")
</pallas_src>

<mosaic_0001>
module attributes {stable_mosaic.version = 11 : i64} {
  func.func @_mlp_kernel(%arg0: i32, %arg1: memref<8x128xf32, #tpu.memory_space<vmem>>, %arg2: memref<128x128xbf16, #tpu.memory_space<vmem>>, %arg3: memref<1x128xf32, #tpu.memory_space<vmem>>, %arg4: memref<128x128xbf16, #tpu.memory_space<vmem>>, %arg5: memref<1x128xf32, #tpu.memory_space<vmem>>, %arg6: memref<1x128xf32, #tpu.memory_space<vmem>>, %arg7: memref<1x1xf32, #tpu.memory_space<vmem>>, %arg8: memref<8x2xf32, #tpu.memory_space<vmem>>) attributes {dimension_semantics = [#tpu.dimension_semantics<parallel>], iteration_bounds = array<i64: 1>, scalar_prefetch = 0 : i64, scratch_operands = 0 : i64, tpu.core_type = #tpu.core_type<tc>, window_params = [{transform_indices = @transform_0, window_bounds = array<i64: 8, 128>}, {pipeline_mode = #tpu.pipeline_mode<synchronous>, transform_indices = @transform_1, window_bounds = array<i64: 128, 128>}, {pipeline_mode = #tpu.pipeline_mode<synchronous>, transform_indices = @transform_2, window_bounds = array<i64: 1, 128>}, {pipeline_mode = #tpu.pipeline_mode<synchronous>, transform_indices = @transform_3, window_bounds = array<i64: 128, 128>}, {pipeline_mode = #tpu.pipeline_mode<synchronous>, transform_indices = @transform_4, window_bounds = array<i64: 1, 128>}, {pipeline_mode = #tpu.pipeline_mode<synchronous>, transform_indices = @transform_5, window_bounds = array<i64: 1, 128>}, {pipeline_mode = #tpu.pipeline_mode<synchronous>, transform_indices = @transform_6, window_bounds = array<i64: 1, 1>}, {transform_indices = @transform_7, window_bounds = array<i64: 8, 2>}]} {
    %c0 = arith.constant 0 : index
    %c0_0 = arith.constant 0 : index
    %0 = vector.load %arg1[%c0, %c0_0] : memref<8x128xf32, #tpu.memory_space<vmem>>, vector<8x128xf32>
    %1 = arith.truncf %0 : vector<8x128xf32> to vector<8x128xbf16>
    %c0_1 = arith.constant 0 : index
    %c0_2 = arith.constant 0 : index
    %2 = vector.load %arg2[%c0_1, %c0_2] : memref<128x128xbf16, #tpu.memory_space<vmem>>, vector<128x128xbf16>
    %cst = arith.constant dense<0.000000e+00> : vector<8x128xf32>
    %3 = tpu.matmul %1, %2, %cst {dimension_numbers = #tpu.dot_dimension_numbers<[1], [0], [0], [1], [0, 0, 1, 1], [], []>} : vector<8x128xbf16>, vector<128x128xbf16>, vector<8x128xf32> -> vector<8x128xf32>
    %c0_3 = arith.constant 0 : index
    %c0_4 = arith.constant 0 : index
    %4 = vector.load %arg3[%c0_3, %c0_4] : memref<1x128xf32, #tpu.memory_space<vmem>>, vector<1x128xf32>
    %5 = vector.broadcast %4 : vector<1x128xf32> to vector<8x128xf32>
    %6 = arith.addf %3, %5 : vector<8x128xf32>
    %cst_5 = arith.constant 0.000000e+00 : f32
    %7 = vector.broadcast %cst_5 : f32 to vector<8x128xf32>
    %8 = arith.maximumf %6, %7 : vector<8x128xf32>
    %9 = arith.truncf %8 : vector<8x128xf32> to vector<8x128xbf16>
    %c0_6 = arith.constant 0 : index
    %c0_7 = arith.constant 0 : index
    %10 = vector.load %arg4[%c0_6, %c0_7] : memref<128x128xbf16, #tpu.memory_space<vmem>>, vector<128x128xbf16>
    %cst_8 = arith.constant dense<0.000000e+00> : vector<8x128xf32>
    %11 = tpu.matmul %9, %10, %cst_8 {dimension_numbers = #tpu.dot_dimension_numbers<[1], [0], [0], [1], [0, 0, 1, 1], [], []>} : vector<8x128xbf16>, vector<128x128xbf16>, vector<8x128xf32> -> vector<8x128xf32>
    %c0_9 = arith.constant 0 : index
    %c0_10 = arith.constant 0 : index
    %12 = vector.load %arg5[%c0_9, %c0_10] : memref<1x128xf32, #tpu.memory_space<vmem>>, vector<1x128xf32>
    %13 = vector.broadcast %12 : vector<1x128xf32> to vector<8x128xf32>
    %14 = arith.addf %11, %13 : vector<8x128xf32>
    %cst_11 = arith.constant 0.000000e+00 : f32
    %15 = vector.broadcast %cst_11 : f32 to vector<8x128xf32>
    %16 = arith.maximumf %14, %15 : vector<8x128xf32>
    %c0_12 = arith.constant 0 : index
    %c0_13 = arith.constant 0 : index
    %17 = vector.load %arg6[%c0_12, %c0_13] : memref<1x128xf32, #tpu.memory_space<vmem>>, vector<1x128xf32>
    %18 = vector.broadcast %17 : vector<1x128xf32> to vector<8x128xf32>
    %19 = arith.mulf %16, %18 : vector<8x128xf32>
    %20 = vector.extract_strided_slice %19 {offsets = [0, 0], sizes = [8, 64], strides = [1, 1]} : vector<8x128xf32> to vector<8x64xf32>
    %cst_14 = arith.constant dense<0.000000e+00> : vector<8xf32>
    %21 = vector.multi_reduction <add>, %20, %cst_14 [1] : vector<8x64xf32> to vector<8xf32>
    %22 = vector.shape_cast %21 : vector<8xf32> to vector<8x1xf32>
    %23 = vector.extract_strided_slice %19 {offsets = [0, 64], sizes = [8, 64], strides = [1, 1]} : vector<8x128xf32> to vector<8x64xf32>
    %cst_15 = arith.constant dense<0.000000e+00> : vector<8xf32>
    %24 = vector.multi_reduction <add>, %23, %cst_15 [1] : vector<8x64xf32> to vector<8xf32>
    %25 = vector.shape_cast %24 : vector<8xf32> to vector<8x1xf32>
    %26 = tpu.concatenate %22, %25 in 1 : vector<8x1xf32>, vector<8x1xf32> -> vector<8x2xf32>
    %c0_16 = arith.constant 0 : index
    %c0_17 = arith.constant 0 : index
    %27 = vector.load %arg7[%c0_16, %c0_17] : memref<1x1xf32, #tpu.memory_space<vmem>>, vector<1x1xf32>
    %28 = vector.broadcast %27 : vector<1x1xf32> to vector<8x2xf32>
    %29 = arith.addf %26, %28 : vector<8x2xf32>
    %c0_18 = arith.constant 0 : index
    %c0_19 = arith.constant 0 : index
    %30 = vector.load %arg8[%c0_18, %c0_19] : memref<8x2xf32, #tpu.memory_space<vmem>>, vector<8x2xf32>
    tpu.vector_store %arg8[%c0_18, %c0_19], %29 {strides = array<i32>} : memref<8x2xf32, #tpu.memory_space<vmem>>, vector<8x2xf32>,
    return
  }
  func.func @transform_0(%arg0: i32) -> (i32, i32) {
    %c0_i32 = arith.constant 0 : i32
    %c0_i32_0 = arith.constant 0 : i32
    return %arg0, %c0_i32 : i32, i32
  }
  func.func @transform_1(%arg0: i32) -> (i32, i32) {
    %c0_i32 = arith.constant 0 : i32
    %c0_i32_0 = arith.constant 0 : i32
    %c0_i32_1 = arith.constant 0 : i32
    return %c0_i32, %c0_i32_0 : i32, i32
  }
  func.func @transform_2(%arg0: i32) -> (i32, i32) {
    %c0_i32 = arith.constant 0 : i32
    %c0_i32_0 = arith.constant 0 : i32
    %c0_i32_1 = arith.constant 0 : i32
    return %c0_i32, %c0_i32_0 : i32, i32
  }
  func.func @transform_3(%arg0: i32) -> (i32, i32) {
    %c0_i32 = arith.constant 0 : i32
    %c0_i32_0 = arith.constant 0 : i32
    %c0_i32_1 = arith.constant 0 : i32
    return %c0_i32, %c0_i32_0 : i32, i32
  }
  func.func @transform_4(%arg0: i32) -> (i32, i32) {
    %c0_i32 = arith.constant 0 : i32
    %c0_i32_0 = arith.constant 0 : i32
    %c0_i32_1 = arith.constant 0 : i32
    return %c0_i32, %c0_i32_0 : i32, i32
  }
  func.func @transform_5(%arg0: i32) -> (i32, i32) {
    %c0_i32 = arith.constant 0 : i32
    %c0_i32_0 = arith.constant 0 : i32
    %c0_i32_1 = arith.constant 0 : i32
    return %c0_i32, %c0_i32_0 : i32, i32
  }
  func.func @transform_6(%arg0: i32) -> (i32, i32) {
    %c0_i32 = arith.constant 0 : i32
    %c0_i32_0 = arith.constant 0 : i32
    %c0_i32_1 = arith.constant 0 : i32
    return %c0_i32, %c0_i32_0 : i32, i32
  }
  func.func @transform_7(%arg0: i32) -> (i32, i32) {
    %c0_i32 = arith.constant 0 : i32
    %c0_i32_0 = arith.constant 0 : i32
    return %arg0, %c0_i32 : i32, i32
  }
}

</mosaic_0001>

<llo_original>
// kernel: dnsmos_head_forward.1
$region0: #{dnsmos_head_forward.1}
  #allocation0 [shape = 'u32[]', space=smem, size = 0x4, offset = 0x4, fixed_abs, tag = 'smem constant byte address 0x4 - core index']
  #allocation1 [shape = 'u32[144,128]{1,0:T(1,128)}', space=vmem, size = 0x12000, scoped, tag = 'internal scratch']
  #allocation2 [shape = 'f32[1,1]{1,0:T(1,128)S(1)}', space=vmem, size = 0x200, scoped, tag = 'scoped memory for dnsmos_head_forward.1']
  %s0 = inlined_call_operand.vmem [shape: f32[8,128], index: 0, kind: input, shape index: {}]
  %s1 = inlined_call_operand.vmem [shape: bf16[128,128], index: 1, kind: input, shape index: {}]
  %s2 = inlined_call_operand.vmem [shape: f32[1,128], index: 2, kind: input, shape index: {}]
  %s3 = inlined_call_operand.vmem [shape: bf16[128,128], index: 3, kind: input, shape index: {}]
  %s4 = inlined_call_operand.vmem [shape: f32[1,128], index: 4, kind: input, shape index: {}]
  %s5 = inlined_call_operand.vmem [shape: f32[1,128], index: 5, kind: input, shape index: {}]
  %s6 = inlined_call_operand.<no memory space> [shape: f32[1,1], index: 6, kind: input, shape index: {}]
  %s7 = inlined_call_operand.vmem [shape: f32[8,2], index: 7, kind: output, shape index: {}]
  %s8 = sld [smem:[#allocation0]]
  $region38: #{dnsmos_head_forward.1} parent=0
    _
  %s10 = ssub.s32 1, %s8
  %s11 = scalar_select 0, %s10, %s8
  %v12 = vstv %s6
  %13 = vst [vmem:[#allocation2] sm:$0x1] %v12
  // Predicated region
  $region2: #{dnsmos_head_forward.1} parent=0 // pred_check
    _
  $region3: #{dnsmos_head_forward.1} parent=0 // pred_check_branch
    %15 = sbr.rel (0) target = $region5
  $region4: #{dnsmos_head_forward.1} parent=0 // pred_region
    _
  $region5: #{dnsmos_head_forward.1} parent=0 // pred_fallthru
    _
  // Predicated region
  $region6: #{dnsmos_head_forward.1} parent=0 // pred_check
    _
  $region7: #{dnsmos_head_forward.1} parent=0 // pred_check_branch
    %17 = sbr.rel (0) target = $region9
  $region8: #{dnsmos_head_forward.1} parent=0 // pred_region
    _
  $region9: #{dnsmos_head_forward.1} parent=0 // pred_fallthru
    _
  // Predicated region
  $region10: #{dnsmos_head_forward.1} parent=0 // pred_check
    _
  $region11: #{dnsmos_head_forward.1} parent=0 // pred_check_branch
    %19 = sbr.rel (0) target = $region13
  $region12: #{dnsmos_head_forward.1} parent=0 // pred_region
    _
  $region13: #{dnsmos_head_forward.1} parent=0 // pred_fallthru
    _
  // Predicated region
  $region14: #{dnsmos_head_forward.1} parent=0 // pred_check
    _
  $region15: #{dnsmos_head_forward.1} parent=0 // pred_check_branch
    %21 = sbr.rel (0) target = $region17
  $region16: #{dnsmos_head_forward.1} parent=0 // pred_region
    _
  $region17: #{dnsmos_head_forward.1} parent=0 // pred_fallthru
    _
  // Predicated region
  $region18: #{dnsmos_head_forward.1} parent=0 // pred_check
    _
  $region19: #{dnsmos_head_forward.1} parent=0 // pred_check_branch
    %23 = sbr.rel (0) target = $region21
  $region20: #{dnsmos_head_forward.1} parent=0 // pred_region
    _
  $region21: #{dnsmos_head_forward.1} parent=0 // pred_fallthru
    _
  // Predicated region
  $region22: #{dnsmos_head_forward.1} parent=0 // pred_check
    _
  $region23: #{dnsmos_head_forward.1} parent=0 // pred_check_branch
    %25 = sbr.rel (0) target = $region25
  $region24: #{dnsmos_head_forward.1} parent=0 // pred_region
    _
  $region25: #{dnsmos_head_forward.1} parent=0 // pred_fallthru
    _
  // Predicated region
  $region26: #{dnsmos_head_forward.1} parent=0 // pred_check
    _
  $region27: #{dnsmos_head_forward.1} parent=0 // pred_check_branch
    %27 = sbr.rel (0) target = $region29
  $region28: #{dnsmos_head_forward.1} parent=0 // pred_region
    _
  $region29: #{dnsmos_head_forward.1} parent=0 // pred_fallthru
    _
  %v29 = vld [vmem:[%s0] sm:$0xff]
  %v30 = vpack.c.bf16 %v29, %v29
  %v31 = vld [vmem:[%s1] sm:$0xf]
  %v32 = vld [vmem:[%s1 + $0x4] sm:$0xf]
  %v33 = vld [vmem:[%s1 + $0x8] sm:$0xf]
  %v34 = vld [vmem:[%s1 + $0xc] sm:$0xf]
  %v35 = vld [vmem:[%s1 + $0x10] sm:$0xf]
  %v36 = vld [vmem:[%s1 + $0x14] sm:$0xf]
  %v37 = vld [vmem:[%s1 + $0x18] sm:$0xf]
  %v38 = vld [vmem:[%s1 + $0x1c] sm:$0xf]
  %v39 = vld [vmem:[%s1 + $0x20] sm:$0xf]
  %v40 = vld [vmem:[%s1 + $0x24] sm:$0xf]
  %v41 = vld [vmem:[%s1 + $0x28] sm:$0xf]
  %v42 = vld [vmem:[%s1 + $0x2c] sm:$0xf]
  %v43 = vld [vmem:[%s1 + $0x30] sm:$0xf]
  %v44 = vld [vmem:[%s1 + $0x34] sm:$0xf]
  %v45 = vld [vmem:[%s1 + $0x38] sm:$0xf]
  %v46 = vld [vmem:[%s1 + $0x3c] sm:$0xf]
  %v47 = vld [vmem:[%s2] sm:$0x1]
  %v49 = vlaneseq
  %v50 = vshrl.u32 %v49, 7
  %v51 = vsub.s32 0, %v50
  %v52 = vrot.slane %v47, %v51
  %v70 = vunpack.c.l.b16 %v31
  %v71 = vunpack.c.l.b16 %v32
  %v72 = vunpack.c.l.b16 %v33
  %v73 = vunpack.c.l.b16 %v34
  %v74 = vunpack.c.l.b16 %v35
  %v75 = vunpack.c.l.b16 %v36
  %v76 = vunpack.c.l.b16 %v37
  %v77 = vunpack.c.l.b16 %v38
  %v78 = vunpack.c.l.b16 %v39
  %v79 = vunpack.c.l.b16 %v40
  %v80 = vunpack.c.l.b16 %v41
  %v81 = vunpack.c.l.b16 %v42
  %v82 = vunpack.c.l.b16 %v43
  %v83 = vunpack.c.l.b16 %v44
  %v84 = vunpack.c.l.b16 %v45
  %v85 = vunpack.c.l.b16 %v46
  %v86 = vpack.c.b16 %v71, %v70
  %v87 = vpack.c.b16 %v73, %v72
  %v88 = vpack.c.b16 %v75, %v74
  %v89 = vpack.c.b16 %v77, %v76
  %v90 = vpack.c.b16 %v79, %v78
  %v91 = vpack.c.b16 %v81, %v80
  %v92 = vpack.c.b16 %v83, %v82
  %v93 = vpack.c.b16 %v85, %v84
  %102 = vmatprep.subr.bf16.mxu0 0
  %103 = vmatpush1.bf16.msra.mxu0 %v93
  %104 = vmatprep.subr.bf16.mxu0 0
  %105 = vmatpush1.bf16.msra.mxu0 %v92
  %106 = vmatprep.subr.bf16.mxu0 0
  %107 = vmatpush1.bf16.msra.mxu0 %v91
  %108 = vmatprep.subr.bf16.mxu0 0
  %109 = vmatpush1.bf16.msra.mxu0 %v90
  %110 = vmatprep.subr.bf16.mxu0 0
  %111 = vmatpush1.bf16.msra.mxu0 %v89
  %112 = vmatprep.subr.bf16.mxu0 0
  %113 = vmatpush1.bf16.msra.mxu0 %v88
  %114 = vmatprep.subr.bf16.mxu0 0
  %115 = vmatpush1.bf16.msra.mxu0 %v87
  %116 = vmatprep.subr.bf16.mxu0 0
  %117 = vmatpush1.bf16.msra.mxu0 %v86
  %118 = vmatprep.subr.bf16.mxu0 0
  %119 = vmatpush2.bf16.msra.mxu0 0
  %120 = vmatprep.subr.bf16.mxu0 0
  %121 = vmatpush2.bf16.msra.mxu0 0
  %122 = vmatprep.subr.bf16.mxu0 0
  %123 = vmatpush2.bf16.msra.mxu0 0
  %124 = vmatprep.subr.bf16.mxu0 0
  %125 = vmatpush2.bf16.msra.mxu0 0
  %126 = vmatprep.subr.bf16.mxu0 0
  %127 = vmatpush2.bf16.msra.mxu0 0
  %128 = vmatprep.subr.bf16.mxu0 0
  %129 = vmatpush2.bf16.msra.mxu0 0
  %130 = vmatprep.subr.bf16.mxu0 0
  %131 = vmatpush2.bf16.msra.mxu0 0
  %132 = vmatprep.subr.bf16.mxu0 0
  %133 = vmatpush2.bf16.msra.mxu0 0
  %134 = vmatprep.mubr.bf16.mxu0 0
  %135 = vmatmul.mubr.bf16.gmra.mxu0 %v30
  %v136 = vpop.f32.mrf.mxu0
  %v137 = vadd.f32 %v52, %v136
  %v138 = vpop.f32.mrf.mxu0
  %v139 = vpop.f32.mrf.mxu0
  %v140 = vpop.f32.mrf.mxu0
  %141 = vdwg.mxu0
  %v142 = vmax.f32 %v137, 0.0
  %v143 = vpack.c.bf16 %v142, %v142
  %v144 = vld [vmem:[%s3] sm:$0xf]
  %v145 = vld [vmem:[%s3 + $0x4] sm:$0xf]
  %v146 = vld [vmem:[%s3 + $0x8] sm:$0xf]
  %v147 = vld [vmem:[%s3 + $0xc] sm:$0xf]
  %v148 = vld [vmem:[%s3 + $0x10] sm:$0xf]
  %v149 = vld [vmem:[%s3 + $0x14] sm:$0xf]
  %v150 = vld [vmem:[%s3 + $0x18] sm:$0xf]
  %v151 = vld [vmem:[%s3 + $0x1c] sm:$0xf]
  %v152 = vld [vmem:[%s3 + $0x20] sm:$0xf]
  %v153 = vld [vmem:[%s3 + $0x24] sm:$0xf]
  %v154 = vld [vmem:[%s3 + $0x28] sm:$0xf]
  %v155 = vld [vmem:[%s3 + $0x2c] sm:$0xf]
  %v156 = vld [vmem:[%s3 + $0x30] sm:$0xf]
  %v157 = vld [vmem:[%s3 + $0x34] sm:$0xf]
  %v158 = vld [vmem:[%s3 + $0x38] sm:$0xf]
  %v159 = vld [vmem:[%s3 + $0x3c] sm:$0xf]
  %v160 = vld [vmem:[%s4] sm:$0x1]
  %v162 = vlaneseq
  %v163 = vshrl.u32 %v162, 7
  %v164 = vsub.s32 0, %v163
  %v165 = vrot.slane %v160, %v164
  %v183 = vunpack.c.l.b16 %v144
  %v184 = vunpack.c.l.b16 %v145
  %v185 = vunpack.c.l.b16 %v146
  %v186 = vunpack.c.l.b16 %v147
  %v187 = vunpack.c.l.b16 %v148
  %v188 = vunpack.c.l.b16 %v149
  %v189 = vunpack.c.l.b16 %v150
  %v190 = vunpack.c.l.b16 %v151
  %v191 = vunpack.c.l.b16 %v152
  %v192 = vunpack.c.l.b16 %v153
  %v193 = vunpack.c.l.b16 %v154
  %v194 = vunpack.c.l.b16 %v155
  %v195 = vunpack.c.l.b16 %v156
  %v196 = vunpack.c.l.b16 %v157
  %v197 = vunpack.c.l.b16 %v158
  %v198 = vunpack.c.l.b16 %v159
  %v199 = vpack.c.b16 %v184, %v183
  %v200 = vpack.c.b16 %v186, %v185
  %v201 = vpack.c.b16 %v188, %v187
  %v202 = vpack.c.b16 %v190, %v189
  %v203 = vpack.c.b16 %v192, %v191
  %v204 = vpack.c.b16 %v194, %v193
  %v205 = vpack.c.b16 %v196, %v195
  %v206 = vpack.c.b16 %v198, %v197
  %215 = vmatprep.subr.bf16.mxu0 0
  %216 = vmatpush1.bf16.msra.mxu0 %v206
  %217 = vmatprep.subr.bf16.mxu0 0
  %218 = vmatpush1.bf16.msra.mxu0 %v205
  %219 = vmatprep.subr.bf16.mxu0 0
  %220 = vmatpush1.bf16.msra.mxu0 %v204
  %221 = vmatprep.subr.bf16.mxu0 0
  %222 = vmatpush1.bf16.msra.mxu0 %v203
  %223 = vmatprep.subr.bf16.mxu0 0
  %224 = vmatpush1.bf16.msra.mxu0 %v202
  %225 = vmatprep.subr.bf16.mxu0 0
  %226 = vmatpush1.bf16.msra.mxu0 %v201
  %227 = vmatprep.subr.bf16.mxu0 0
  %228 = vmatpush1.bf16.msra.mxu0 %v200
  %229 = vmatprep.subr.bf16.mxu0 0
  %230 = vmatpush1.bf16.msra.mxu0 %v199
  %231 = vmatprep.subr.bf16.mxu0 0
  %232 = vmatpush2.bf16.msra.mxu0 0
  %233 = vmatprep.subr.bf16.mxu0 0
  %234 = vmatpush2.bf16.msra.mxu0 0
  %235 = vmatprep.subr.bf16.mxu0 0
  %236 = vmatpush2.bf16.msra.mxu0 0
  %237 = vmatprep.subr.bf16.mxu0 0
  %238 = vmatpush2.bf16.msra.mxu0 0
  %239 = vmatprep.subr.bf16.mxu0 0
  %240 = vmatpush2.bf16.msra.mxu0 0
  %241 = vmatprep.subr.bf16.mxu0 0
  %242 = vmatpush2.bf16.msra.mxu0 0
  %243 = vmatprep.subr.bf16.mxu0 0
  %244 = vmatpush2.bf16.msra.mxu0 0
  %245 = vmatprep.subr.bf16.mxu0 0
  %246 = vmatpush2.bf16.msra.mxu0 0
  %247 = vmatprep.mubr.bf16.mxu0 0
  %248 = vmatmul.mubr.bf16.gmra.mxu0 %v143
  %v249 = vpop.f32.mrf.mxu0
  %v250 = vadd.f32 %v165, %v249
  %v251 = vpop.f32.mrf.mxu0
  %v252 = vpop.f32.mrf.mxu0
  %v253 = vpop.f32.mrf.mxu0
  %254 = vdwg.mxu0
  %v255 = vmax.f32 %v250, 0.0
  %v256 = vld [vmem:[%s5] sm:$0x1]
  %v258 = vlaneseq
  %v259 = vshrl.u32 %v258, 7
  %v260 = vsub.s32 0, %v259
  %v261 = vrot.slane %v256, %v260
  %v263 = vmul.f32 %v255, %v261
  %vm264 = vcmask 523264
  %v265 = vsel %vm264, %v263, 0.0
  %266 = vadd.xlane.f32.xlu0 %v265
  %v267 = vpop.xlane.xlu0 %266
  %269 = vrot.lane.b32.xlu0 %v263, 64
  %v270 = vpop.permute.xlu0 %269
  %v272 = vsel %vm264, %v270, 0.0
  %273 = vadd.xlane.f32.xlu0 %v272
  %v274 = vpop.xlane.xlu0 %273
  %vm275 = vcmask 7168
  %v276 = vsel %vm275, %v267, %v274
  %v277 = vld [vmem:[#allocation2] sm:$0x1]
  %v279 = vlaneseq
  %v280 = vshrl.u32 %v279, 7
  %v281 = vsub.s32 0, %v280
  %v282 = vrot.slane %v277, %v281
  %283 = vset.pattern.permute.xlu0 0
  %284 = vperm.xlu0 %283, %v282
  %v285 = vpop.permute.xlu0 %284
  %v287 = vadd.f32 %v276, %v285
  %vm288 = vcmask 15360
  %289 = vst.msk [vmem:[%s7] sm:$0xff] %vm288, %v287
  // Predicated region
  $region30: #{dnsmos_head_forward.1} parent=0 // pred_check
    _
  $region31: #{dnsmos_head_forward.1} parent=0 // pred_check_branch
    %291 = sbr.rel (0) target = $region33
  $region32: #{dnsmos_head_forward.1} parent=0 // pred_region
    _
  $region33: #{dnsmos_head_forward.1} parent=0 // pred_fallthru
    _
  // Predicated region
  $region34: #{dnsmos_head_forward.1} parent=0 // pred_check
    _
  $region35: #{dnsmos_head_forward.1} parent=0 // pred_check_branch
    %293 = sbr.rel (0) target = $region37
  $region36: #{dnsmos_head_forward.1} parent=0 // pred_region
    _
  $region37: #{dnsmos_head_forward.1} parent=0 // pred_fallthru
    _

</llo_original>
